<compile_context>
chip_gen: v7x
topology: tpu7x:2x2x1
jax: 0.10.0
libtpu: 0.0.40
codegen_flags: <defaults>
</compile_context>

<pallas_src>
import functools

import jax
import jax.numpy as jnp
from jax.experimental import pallas as pl
from jax.experimental.pallas import tpu as pltpu


def _round_up(n, m):
    return ((n + m - 1) // m) * m


def _bin_pool_kernel(w_ref, x_ref, o_ref, *, compute_dtype):
    # w_ref: (G, C)       region-pooling weights (zero outside each region)
    # x_ref: (Bb, C, Tt)  a block of batch elements x one time tile (native dtype)
    # o_ref: (Bb, G, Tt)  pooled bin for that block
    w = w_ref[...].astype(compute_dtype)

    def body(i, carry):
        # Cast right after the load: VPU cast co-issues; DMA/vld is the binding slot.
        xi = x_ref[i].astype(compute_dtype)                      # (C, Tt)
        o_ref[i] = jnp.dot(
            w, xi, preferred_element_type=jnp.float32
        ).astype(o_ref.dtype)                                    # (G, Tt)
        return carry

    # Bounded vreg liveness + scheduler visibility (vs. a static Python for).
    jax.lax.fori_loop(0, x_ref.shape[0], body, 0, unroll=True)


def bin_forward(
    x,
    w,
    *,
    time_tile=8192,
    batch_block=8,
    compute_dtype=jnp.bfloat16,
    out_dtype=None,
):
    """Apply the _Bin pooling: x (B, C, T), w (G, C) -> (B, G, T)."""
    B, C, T = x.shape
    G, Cw = w.shape
    assert Cw == C, "weight matrix channel dim must match x"

    out_dtype = x.dtype if out_dtype is None else out_dtype
    compute_dtype = x.dtype if compute_dtype is None else compute_dtype

    x_item = jnp.dtype(x.dtype).itemsize
    o_item = jnp.dtype(out_dtype).itemsize
    w_item = jnp.dtype(w.dtype).itemsize

    # --- generation-aware VMEM budget -----------------------------------------
    try:
        vmem_cap = int(pltpu.get_tpu_info().vmem_capacity_bytes)
    except Exception:
        vmem_cap = 64 << 20  # conservative: v7x per-TC physical VMEM
    vmem_budget = (vmem_cap * 3) // 4  # compiler headroom

    # --- tiling ----------------------------------------------------------------
    Bb = max(1, min(batch_block, B))

    # Double-buffered x tile + out tile bytes per time column.
    bytes_per_col = 2 * Bb * (C * x_item + G * o_item)
    tt_budget = max(128, (vmem_budget // max(bytes_per_col, 1)) // 128 * 128)
    tcap = min(_round_up(time_tile, 128), tt_budget)

    if T % 128 == 0:
        Tt = min(tcap, T)                      # lane-dense; may leave a ragged last tile
    elif T < tcap:
        Tt = T                                 # full-dim exception: single (lane-ragged) tile
    else:
        Tt = min(tcap, (T // 128) * 128)       # lane-dense; ragged last tile write-masked

    grid = (pl.cdiv(B, Bb), pl.cdiv(T, Tt))    # time innermost -> streaming DMAs

    working_set = 2 * Bb * Tt * (C * x_item + G * o_item) + 2 * G * C * w_item
    vmem_limit = int(min(max(2 * working_set, 8 << 20), vmem_budget))

    cost = pl.CostEstimate(
        flops=2 * B * G * C * T,
        transcendentals=0,
        bytes_accessed=B * C * T * x_item + B * G * T * o_item + G * C * w_item,
    )

    kernel = functools.partial(_bin_pool_kernel, compute_dtype=compute_dtype)

    return pl.pallas_call(
        kernel,
        out_shape=jax.ShapeDtypeStruct((B, G, T), out_dtype),
        grid_spec=pltpu.PrefetchScalarGridSpec(
            num_scalar_prefetch=0,
            grid=grid,
            in_specs=[
                # Weights: tiny, resident across the whole grid.
                pl.BlockSpec((G, C), lambda b, t: (0, 0)),
                # x tile: native dtype straight from HBM (no wrapper copy/cast).
                pl.BlockSpec((Bb, C, Tt), lambda b, t: (b, 0, t)),
            ],
            # Output: only the G real rows go back to HBM (no padded rows).
            out_specs=pl.BlockSpec((Bb, G, Tt), lambda b, t: (b, 0, t)),
        ),
        compiler_params=pltpu.CompilerParams(
            dimension_semantics=("parallel", "parallel"),
            vmem_limit_bytes=vmem_limit,
        ),
        cost_estimate=cost,
    )(w, x)


def build_region_weight_matrix(region_indices, num_channels, key):
    """Deterministically init per-region pooling parameters and scatter them
    into a dense (num_regions, num_channels) matrix with softmax within each
    region (GroupPoolingModule with num_pooling_modules == len(path))."""
    G = len(region_indices)
    W = jnp.zeros((G, num_channels), dtype=jnp.float32)
    keys = jax.random.split(key, G)
    for g, idx in enumerate(region_indices):
        theta_g = jax.random.normal(keys[g], (len(idx),), dtype=jnp.float32)
        w_g = jax.nn.softmax(theta_g)
        W = W.at[g, jnp.asarray(idx, dtype=jnp.int32)].set(w_g)
    return W


if __name__ == "__main__":
    key = jax.random.PRNGKey(0)
    k_x, k_w = jax.random.split(key)

    # Small, _Bin-consistent shapes: EEG data (batch, channels, time)
    B, C, T = 2, 16, 256
    x = jax.random.normal(k_x, (B, C, T), dtype=jnp.float32)

    # ChannelSplit result: 4 regions ("path" of ChGroups), each owning 4 channels.
    # Deterministic path ordering (stands in for random.sample in generate_module).
    path_regions = [
        [3, 7, 11, 15],
        [0, 4, 8, 12],
        [2, 6, 10, 14],
        [1, 5, 9, 13],
    ]
    W = build_region_weight_matrix(path_regions, num_channels=C, key=k_w)

    out = bin_forward(x, W)
    out = jax.block_until_ready(out)
    assert out.shape == (B, len(path_regions), T)

    # Reference 1: same-precision reference (inputs rounded to the kernel's bf16
    # compute dtype, f32 accumulation) -- must match tightly.
    x_c = x.astype(jnp.bfloat16).astype(jnp.float32)
    w_c = W.astype(jnp.bfloat16).astype(jnp.float32)
    ref_same_prec = jnp.einsum("gc,bct->bgt", w_c, x_c)
    assert jnp.allclose(out, ref_same_prec, atol=1e-3, rtol=1e-3)

    # Reference 2: full-f32 reference -- loose sanity bound for the bf16 compute path.
    ref_f32 = jnp.einsum("gc,bct->bgt", W, x)
    assert jnp.allclose(out, ref_f32, atol=5e-2, rtol=5e-2)

    # Exact-f32 path (compute_dtype=None) should match the PyTorch module tightly.
    out_f32 = jax.block_until_ready(bin_forward(x, W, compute_dtype=None))
    assert jnp.allclose(out_f32, ref_f32, atol=1e-5, rtol=1e-5)

    # TODO(synk): pooling methods requiring `precomputed` features or
    # channel-system-dependent dynamic index lookup at runtime are resolved
    # host-side here (region indices baked into the dense weight matrix W),
    # not inside the kernel.

    print("KERNEL_OK")
</pallas_src>

<mosaic_0001>
module attributes {stable_mosaic.version = 11 : i64} {
  func.func @_bin_pool_kernel(%arg0: i32, %arg1: i32, %arg2: memref<4x16xf32, #tpu.memory_space<vmem>>, %arg3: memref<2x16x256xf32, #tpu.memory_space<vmem>>, %arg4: memref<2x4x256xf32, #tpu.memory_space<vmem>>) attributes {dimension_semantics = [#tpu.dimension_semantics<parallel>, #tpu.dimension_semantics<parallel>], iteration_bounds = array<i64: 1, 1>, scalar_prefetch = 0 : i64, scratch_operands = 0 : i64, tpu.core_type = #tpu.core_type<tc>, window_params = [{pipeline_mode = #tpu.pipeline_mode<synchronous>, transform_indices = @transform_0, window_bounds = array<i64: 4, 16>}, {transform_indices = @transform_1, window_bounds = array<i64: 2, 16, 256>}, {transform_indices = @transform_2, window_bounds = array<i64: 2, 4, 256>}]} {
    %c0 = arith.constant 0 : index
    %c0_0 = arith.constant 0 : index
    %0 = vector.load %arg2[%c0, %c0_0] : memref<4x16xf32, #tpu.memory_space<vmem>>, vector<4x16xf32>
    %1 = arith.truncf %0 : vector<4x16xf32> to vector<4x16xbf16>
    %c0_i32 = arith.constant 0 : i32
    %2 = arith.index_cast %c0_i32 : i32 to index
    %c0_1 = arith.constant 0 : index
    %c0_2 = arith.constant 0 : index
    %3 = vector.load %arg3[%2, %c0_1, %c0_2] : memref<2x16x256xf32, #tpu.memory_space<vmem>>, vector<1x16x256xf32>
    %4 = vector.shape_cast %3 : vector<1x16x256xf32> to vector<16x256xf32>
    %5 = arith.truncf %4 : vector<16x256xf32> to vector<16x256xbf16>
    %cst = arith.constant dense<0.000000e+00> : vector<4x256xf32>
    %6 = tpu.matmul %1, %5, %cst {dimension_numbers = #tpu.dot_dimension_numbers<[1], [0], [0], [1], [0, 0, 1, 1], [], []>} : vector<4x16xbf16>, vector<16x256xbf16>, vector<4x256xf32> -> vector<4x256xf32>
    %7 = arith.index_cast %c0_i32 : i32 to index
    %c0_3 = arith.constant 0 : index
    %c0_4 = arith.constant 0 : index
    %8 = vector.load %arg4[%7, %c0_3, %c0_4] : memref<2x4x256xf32, #tpu.memory_space<vmem>>, vector<1x4x256xf32>
    %9 = vector.shape_cast %8 : vector<1x4x256xf32> to vector<4x256xf32>
    %10 = vector.shape_cast %6 : vector<4x256xf32> to vector<1x4x256xf32>
    tpu.vector_store %arg4[%7, %c0_3, %c0_4], %10 {strides = array<i32>} : memref<2x4x256xf32, #tpu.memory_space<vmem>>, vector<1x4x256xf32>,
    %c1_i32 = arith.constant 1 : i32
    %11 = arith.index_cast %c1_i32 : i32 to index
    %c0_5 = arith.constant 0 : index
    %c0_6 = arith.constant 0 : index
    %12 = vector.load %arg3[%11, %c0_5, %c0_6] : memref<2x16x256xf32, #tpu.memory_space<vmem>>, vector<1x16x256xf32>
    %13 = vector.shape_cast %12 : vector<1x16x256xf32> to vector<16x256xf32>
    %14 = arith.truncf %13 : vector<16x256xf32> to vector<16x256xbf16>
    %cst_7 = arith.constant dense<0.000000e+00> : vector<4x256xf32>
    %15 = tpu.matmul %1, %14, %cst_7 {dimension_numbers = #tpu.dot_dimension_numbers<[1], [0], [0], [1], [0, 0, 1, 1], [], []>} : vector<4x16xbf16>, vector<16x256xbf16>, vector<4x256xf32> -> vector<4x256xf32>
    %16 = arith.index_cast %c1_i32 : i32 to index
    %c0_8 = arith.constant 0 : index
    %c0_9 = arith.constant 0 : index
    %17 = vector.load %arg4[%16, %c0_8, %c0_9] : memref<2x4x256xf32, #tpu.memory_space<vmem>>, vector<1x4x256xf32>
    %18 = vector.shape_cast %17 : vector<1x4x256xf32> to vector<4x256xf32>
    %19 = vector.shape_cast %15 : vector<4x256xf32> to vector<1x4x256xf32>
    tpu.vector_store %arg4[%16, %c0_8, %c0_9], %19 {strides = array<i32>} : memref<2x4x256xf32, #tpu.memory_space<vmem>>, vector<1x4x256xf32>,
    %c2_i32 = arith.constant 2 : i32
    return
  }
  func.func @transform_0(%arg0: i32, %arg1: i32) -> (i32, i32) {
    %c0_i32 = arith.constant 0 : i32
    %c0_i32_0 = arith.constant 0 : i32
    %c0_i32_1 = arith.constant 0 : i32
    return %c0_i32, %c0_i32_0 : i32, i32
  }
  func.func @transform_1(%arg0: i32, %arg1: i32) -> (i32, i32, i32) {
    %c0_i32 = arith.constant 0 : i32
    %c0_i32_0 = arith.constant 0 : i32
    return %arg0, %c0_i32, %arg1 : i32, i32, i32
  }
  func.func @transform_2(%arg0: i32, %arg1: i32) -> (i32, i32, i32) {
    %c0_i32 = arith.constant 0 : i32
    %c0_i32_0 = arith.constant 0 : i32
    return %arg0, %c0_i32, %arg1 : i32, i32, i32
  }
}

</mosaic_0001>

<llo_original>
// kernel: tpu_custom_call.1
$region0: #{tpu_custom_call.1}
  #allocation0 [shape = 'u32[]', space=smem, size = 0x4, offset = 0x4, fixed_abs, tag = 'smem constant byte address 0x4 - core index']
  #allocation1 [shape = 'u32[144,128]{1,0:T(1,128)}', space=vmem, size = 0x12000, scoped, tag = 'internal scratch']
  %s0 = inlined_call_operand.hbm [shape: f32[4,16], index: 0, kind: input, shape index: {}]
  %s1 = inlined_call_operand.hbm [shape: f32[2,16,256], index: 1, kind: input, shape index: {}]
  %s2 = inlined_call_operand.hbm [shape: f32[2,4,256], index: 2, kind: output, shape index: {}]
  %s3 = sld [smem:[#allocation0]]
  $region26: #{tpu_custom_call.1} parent=0
    _
  %s5 = ssub.s32 1, %s3
  %s6 = scalar_select 0, %s5, %s3
  $region1: #{tpu_custom_call.1} parent=0
    #allocation2 [shape = 'u8[2048]{0}', space=vmem, size = 0x800, scoped, tag = 'input window, operand 0, single buffered']
    #allocation3 [shape = 's32[1]{0}', space=sflag, size = 0x4, scoped, tag = 'scoped memory for tpu_custom_call.1']
    #allocation4 [shape = 's32[1]{0}', space=sflag, size = 0x4, scoped, tag = 'scoped memory for tpu_custom_call.1']
    #allocation5 [shape = 'u8[32768]{0}', space=vmem, size = 0x8000, scoped, tag = 'input window, operand 1, single buffered']
    #allocation6 [shape = 's32[1]{0}', space=sflag, size = 0x4, scoped, tag = 'scoped memory for tpu_custom_call.1']
    #allocation7 [shape = 'u8[8192]{0}', space=vmem, size = 0x2000, scoped, tag = 'output window, operand 0, single buffered']
    %7 = vsyncpa [#allocation3], 0
    %8 = vsyncpa [#allocation6], 0
    %9 = vsyncpa [#allocation4], 0
    // Predicated region
    $region2: #{tpu_custom_call.1} parent=1 // pred_check
      _
    $region3: #{tpu_custom_call.1} parent=1 // pred_check_branch
      %11 = sbr.rel (0) target = $region5
    $region4: #{tpu_custom_call.1} parent=1 // pred_region
      %s13 = ssub.s32 64, 64
      %14 = vsyncadd [#allocation3], %s13
      %s16 = sshll.u32 [#allocation2], 4
      %s17 = int_to_ptr.vmem [resolvable:$true] %s16
      %19 = dma.hbm_to_vmem [thread:$0]  %s0, 64, %s17, [#allocation3]
    $region5: #{tpu_custom_call.1} parent=1 // pred_fallthru
      _
    // Predicated region
    $region6: #{tpu_custom_call.1} parent=1 // pred_check
      _
    $region7: #{tpu_custom_call.1} parent=1 // pred_check_branch
      %21 = sbr.rel (0) target = $region9
    $region8: #{tpu_custom_call.1} parent=1 // pred_region
      %s23 = ssub.s32 1024, 1024
      %24 = vsyncadd [#allocation6], %s23
      %s25 = sshll.u32 [#allocation5], 4
      %s26 = int_to_ptr.vmem [resolvable:$true] %s25
      %31 = dma.hbm_to_vmem [thread:$0]  %s1, 1024, %s26, [#allocation6], 256, 256, 16
    $region9: #{tpu_custom_call.1} parent=1 // pred_fallthru
      _
    // Predicated region
    $region10: #{tpu_custom_call.1} parent=1 // pred_check
      _
    $region11: #{tpu_custom_call.1} parent=1 // pred_check_branch
      %33 = sbr.rel (0) target = $region13
    $region12: #{tpu_custom_call.1} parent=1 // pred_region
      %34 = dma.done [#allocation3], 64
    $region13: #{tpu_custom_call.1} parent=1 // pred_fallthru
      _
    // Predicated region
    $region14: #{tpu_custom_call.1} parent=1 // pred_check
      _
    $region15: #{tpu_custom_call.1} parent=1 // pred_check_branch
      %36 = sbr.rel (0) target = $region17
    $region16: #{tpu_custom_call.1} parent=1 // pred_region
      %37 = dma.done [#allocation6], 1024
    $region17: #{tpu_custom_call.1} parent=1 // pred_fallthru
      _
    %v39 = vld [vmem:[#allocation2] sm:$0xf]
    %v40 = vpack.c.bf16 %v39, %v39
    %v41 = vld [vmem:[#allocation5] sm:$0xff]
    %v42 = vld [vmem:[#allocation5 + $0x8] sm:$0xff]
    %v43 = vld [vmem:[#allocation5 + $0x10] sm:$0xff]
    %v44 = vld [vmem:[#allocation5 + $0x18] sm:$0xff]
    %v45 = vpack.c.bf16 %v43, %v41
    %v46 = vpack.c.bf16 %v44, %v42
    %vm47 = vcmask 130048
    %v49 = vsel %vm47, %v40, 0
    %51 = vmatprep.subr.bf16.mxu0 %v46
    %52 = vmatpush1.bf16.msra.mxu0 %v45
    %53 = vmatprep.subr.bf16.mxu0 0
    %54 = vmatpush1.bf16.msra.mxu0 0
    %55 = vmatprep.subr.bf16.mxu0 0
    %56 = vmatpush1.bf16.msra.mxu0 0
    %57 = vmatprep.subr.bf16.mxu0 0
    %58 = vmatpush1.bf16.msra.mxu0 0
    %59 = vmatprep.subr.bf16.mxu0 0
    %60 = vmatpush1.bf16.msra.mxu0 0
    %61 = vmatprep.subr.bf16.mxu0 0
    %62 = vmatpush1.bf16.msra.mxu0 0
    %63 = vmatprep.subr.bf16.mxu0 0
    %64 = vmatpush1.bf16.msra.mxu0 0
    %65 = vmatprep.subr.bf16.mxu0 0
    %66 = vmatpush1.bf16.msra.mxu0 0
    %67 = vmatprep.subr.bf16.mxu0 0
    %68 = vmatpush1.bf16.msra.mxu0 0
    %69 = vmatprep.subr.bf16.mxu0 0
    %70 = vmatpush1.bf16.msra.mxu0 0
    %71 = vmatprep.subr.bf16.mxu0 0
    %72 = vmatpush1.bf16.msra.mxu0 0
    %73 = vmatprep.subr.bf16.mxu0 0
    %74 = vmatpush1.bf16.msra.mxu0 0
    %75 = vmatprep.subr.bf16.mxu0 0
    %76 = vmatpush1.bf16.msra.mxu0 0
    %77 = vmatprep.subr.bf16.mxu0 0
    %78 = vmatpush1.bf16.msra.mxu0 0
    %79 = vmatprep.subr.bf16.mxu0 0
    %80 = vmatpush1.bf16.msra.mxu0 0
    %81 = vmatprep.subr.bf16.mxu0 0
    %82 = vmatpush1.bf16.msra.mxu0 0
    %83 = vmatprep.mubr.bf16.mxu0 0
    %84 = vmatmul.mubr.bf16.gmra.mrb[0].mxu0 %v49
    %v85 = vpop.f32.mrb[0].mxu0
    %v86 = vadd.f32 0.0, %v85
    %v87 = vpop.f32.mrb[0].mxu0
    %v88 = vadd.f32 0.0, %v87
    %v89 = vpop.f32.mrb[0].mxu0
    %v90 = vpop.f32.mrb[0].mxu0
    %91 = vdwg.mxu0
    %v94 = vcombine.low %v86, %v88
    %96 = vst [vmem:[#allocation7] sm:$0xff] %v94
    %s97 = scalar_lea.vmem [#allocation5], 32
    %v98 = vld [vmem:[%s97] sm:$0xff]
    %v99 = vld [vmem:[%s97 + $0x8] sm:$0xff]
    %v100 = vld [vmem:[%s97 + $0x10] sm:$0xff]
    %v101 = vld [vmem:[%s97 + $0x18] sm:$0xff]
    %v102 = vpack.c.bf16 %v100, %v98
    %v103 = vpack.c.bf16 %v101, %v99
    %104 = vmatprep.subr.bf16.mxu0 %v103
    %105 = vmatpush1.bf16.msra.mxu0 %v102
    %106 = vmatprep.subr.bf16.mxu0 0
    %107 = vmatpush1.bf16.msra.mxu0 0
    %108 = vmatprep.subr.bf16.mxu0 0
    %109 = vmatpush1.bf16.msra.mxu0 0
    %110 = vmatprep.subr.bf16.mxu0 0
    %111 = vmatpush1.bf16.msra.mxu0 0
    %112 = vmatprep.subr.bf16.mxu0 0
    %113 = vmatpush1.bf16.msra.mxu0 0
    %114 = vmatprep.subr.bf16.mxu0 0
    %115 = vmatpush1.bf16.msra.mxu0 0
    %116 = vmatprep.subr.bf16.mxu0 0
    %117 = vmatpush1.bf16.msra.mxu0 0
    %118 = vmatprep.subr.bf16.mxu0 0
    %119 = vmatpush1.bf16.msra.mxu0 0
    %120 = vmatprep.subr.bf16.mxu0 0
    %121 = vmatpush1.bf16.msra.mxu0 0
    %122 = vmatprep.subr.bf16.mxu0 0
    %123 = vmatpush1.bf16.msra.mxu0 0
    %124 = vmatprep.subr.bf16.mxu0 0
    %125 = vmatpush1.bf16.msra.mxu0 0
    %126 = vmatprep.subr.bf16.mxu0 0
    %127 = vmatpush1.bf16.msra.mxu0 0
    %128 = vmatprep.subr.bf16.mxu0 0
    %129 = vmatpush1.bf16.msra.mxu0 0
    %130 = vmatprep.subr.bf16.mxu0 0
    %131 = vmatpush1.bf16.msra.mxu0 0
    %132 = vmatprep.subr.bf16.mxu0 0
    %133 = vmatpush1.bf16.msra.mxu0 0
    %134 = vmatprep.subr.bf16.mxu0 0
    %135 = vmatpush1.bf16.msra.mxu0 0
    %136 = vmatprep.mubr.bf16.mxu0 0
    %137 = vmatmul.mubr.bf16.gmra.mrb[0].mxu0 %v49
    %v138 = vpop.f32.mrb[0].mxu0
    %v139 = vadd.f32 0.0, %v138
    %v140 = vpop.f32.mrb[0].mxu0
    %v141 = vadd.f32 0.0, %v140
    %v142 = vpop.f32.mrb[0].mxu0
    %v143 = vpop.f32.mrb[0].mxu0
    %144 = vdwg.mxu0
    %v147 = vcombine.low %v139, %v141
    %s149 = scalar_lea.vmem [#allocation7], 8
    %150 = vst [vmem:[%s149] sm:$0xff] %v147
    // Predicated region
    $region18: #{tpu_custom_call.1} parent=1 // pred_check
      _
    $region19: #{tpu_custom_call.1} parent=1 // pred_check_branch
      %152 = sbr.rel (0) target = $region21
    $region20: #{tpu_custom_call.1} parent=1 // pred_region
      %s154 = ssub.s32 256, 256
      %155 = vsyncadd [#allocation4], %s154
      %s156 = sshll.u32 [#allocation7], 4
      %s157 = int_to_ptr.vmem [resolvable:$true] %s156
      %162 = dma.vmem_to_hbm [thread:$0]  %s157, 256, %s2, [#allocation4], 128, 128, 8
    $region21: #{tpu_custom_call.1} parent=1 // pred_fallthru
      _
    // Predicated region
    $region22: #{tpu_custom_call.1} parent=1 // pred_check
      _
    $region23: #{tpu_custom_call.1} parent=1 // pred_check_branch
      %164 = sbr.rel (0) target = $region25
    $region24: #{tpu_custom_call.1} parent=1 // pred_region
      %165 = dma.done [#allocation4], 256
    $region25: #{tpu_custom_call.1} parent=1 // pred_fallthru
      _
    %166 = vsyncpa [#allocation3], 1
    %167 = vsyncpa [#allocation6], 1
    %168 = vsyncpa [#allocation4], 1

</llo_original>
